<compile_context>
chip_gen: v5e
topology: v5e:2x2
jax: 0.10.0
libtpu: 0.0.40
codegen_flags: <defaults>
</compile_context>

<pallas_src>
import functools

import jax
import jax.numpy as jnp
from jax.experimental import pallas as pl
from jax.experimental.pallas import tpu as pltpu


_NUM_CORES = 2        # leading "parallel" grid axis: megacore split on v7x,
                      # plain serial (same total step count) on v5e/v6e.
_LANE = 128
_MAX_TB = 131072      # cap: 2 inputs x 2 bufs x (8*TB*4B) + acc ~ 17 MiB (f32)


def _round_up(x, m):
    return ((x + m - 1) // m) * m


def _cdiv(a, b):
    return (a + b - 1) // b


def _make_kernel(inv_3b, beta_inv_4b):
    """inv_3b = 1/(3B), beta_inv_4b = beta/(4B): compile-time constants."""

    def kernel(y_ref, t_ref, out_ref, acc_ref):
        i = pl.program_id(1)  # inner (reduction) axis over batch tiles

        @pl.when(i == 0)
        def _init():
            acc_ref[...] = jnp.zeros_like(acc_ref)

        # Blocks are (8, TB): rows 0:3 = translation, rows 3:7 = quaternion,
        # row 7 = zero padding. Batch occupies the 128-lane axis.
        y = y_ref[...].astype(jnp.float32)
        t = t_ref[...].astype(jnp.float32)

        yx, yq = y[0:3, :], y[3:7, :]
        tx, tq = t[0:3, :], t[3:7, :]

        # Translation: per-lane sum of squared error over 3 sublane rows.
        dx = yx - tx
        sx = jnp.sum(dx * dx, axis=0, keepdims=True)              # (1, TB)

        # Quaternion: F.normalize(p=2, dim=1, eps=1e-12) ==
        #   v * rsqrt(max(sum(v^2), eps^2))  ==  v / max(||v||, eps)
        eps2 = jnp.float32(1e-24)                                  # eps^2
        y_inv = jax.lax.rsqrt(
            jnp.maximum(jnp.sum(yq * yq, axis=0, keepdims=True), eps2))
        t_inv = jax.lax.rsqrt(
            jnp.maximum(jnp.sum(tq * tq, axis=0, keepdims=True), eps2))
        dq = yq * y_inv - tq * t_inv
        sq = jnp.sum(dq * dq, axis=0, keepdims=True)               # (1, TB)

        # Zero-padded batch lanes contribute exactly 0 to both sums, so the
        # true-batch divisors (folded into the constants) give the exact means.
        acc_ref[...] += sx * inv_3b + sq * beta_inv_4b

        @pl.when(i == pl.num_programs(1) - 1)
        def _finalize():
            # One cross-lane reduce per core; this core's partial goes into its
            # own lane-dense (1, 128) output block (summed in the wrapper).
            s = jnp.sum(acc_ref[...], keepdims=True)               # (1, 1)
            out_ref[...] = jnp.broadcast_to(s, (1, _LANE))

    return kernel


def _loss_from_slabs(yT, tT, batch, beta, tb):
    """yT, tT: (8, Bp) slabs — pose dim on sublanes, batch (zero-padded) on lanes.

    Producers that already hold poses in this layout can call this directly and
    skip the transpose+pad HBM pass done by `posenet_criterion`.
    """
    _, bp = yT.shape
    n_inner = bp // (_NUM_CORES * tb)
    assert _NUM_CORES * n_inner * tb == bp

    inv_3b = 1.0 / (3.0 * batch)
    beta_inv_4b = float(beta) / (4.0 * batch)

    in_spec = pl.BlockSpec((8, tb), lambda c, i: (0, c * n_inner + i))

    itemsize = jnp.dtype(yT.dtype).itemsize
    # 2 inputs x 2 pipeline buffers x tile + f32 lane accumulator + margin.
    vmem_need = 2 * 2 * 8 * tb * itemsize + 4 * tb + (1 << 20)
    vmem_limit = int(max(vmem_need, 16 << 20))

    cost = pl.CostEstimate(
        flops=int(30 * bp),
        transcendentals=int(2 * bp),
        bytes_accessed=int(2 * 8 * bp * itemsize + _NUM_CORES * _LANE * 4),
    )

    partials = pl.pallas_call(
        _make_kernel(inv_3b, beta_inv_4b),
        out_shape=jax.ShapeDtypeStruct((1, _NUM_CORES * _LANE), jnp.float32),
        grid_spec=pltpu.PrefetchScalarGridSpec(
            num_scalar_prefetch=0,
            grid=(_NUM_CORES, n_inner),
            in_specs=[in_spec, in_spec],
            out_specs=pl.BlockSpec((1, _LANE), lambda c, i: (0, c)),
            scratch_shapes=[pltpu.VMEM((1, tb), jnp.float32)],
        ),
        compiler_params=pltpu.CompilerParams(
            dimension_semantics=("parallel", "arbitrary"),
            vmem_limit_bytes=vmem_limit),
        cost_estimate=cost,
    )(yT, tT)

    # Each core's (1, 128) block holds its partial broadcast across lanes;
    # pick lane 0 of each block and add (tiny XLA op).
    per_core = partials.reshape(_NUM_CORES, _LANE)[:, 0]
    return jnp.sum(per_core)


@functools.partial(jax.jit, static_argnames=("beta", "block_b"))
def posenet_criterion(y, t, beta=512.0, block_b=65536):
    """y, t: [B, 7] poses (any float dtype). Returns the scalar loss (f32)."""
    B, D = y.shape
    assert D == 7 and t.shape == (B, 7)

    # Lane tile per core: multiple of 128, at most block_b, at most the
    # (rounded) per-core share of the batch, hard-capped for v7x VMEM.
    per_core = _round_up(_cdiv(B, _NUM_CORES), _LANE)
    tb = min(_round_up(int(block_b), _LANE), per_core, _MAX_TB)
    n_inner = _cdiv(B, _NUM_CORES * tb)
    bp = _NUM_CORES * n_inner * tb

    def prep(a):
        # TODO(synk): this transpose+pad is an extra HBM pass; producers that
        # can emit poses directly as [8, B] slabs (batch on the fast axis)
        # should call _loss_from_slabs and skip it (allow_input_fusion not
        # used here for lowering robustness).
        a = jnp.transpose(a)                        # (7, B): pose -> sublanes
        return jnp.pad(a, ((0, 1), (0, bp - B)))    # (8, Bp): zero pad

    return _loss_from_slabs(prep(y), prep(t), B, beta, tb)


def posenet_criterion_ref(y, t, beta=512.0):
    """Pure-JAX reference mirroring the PyTorch forward exactly."""
    y = y.astype(jnp.float32)
    t = t.astype(jnp.float32)
    eps = 1e-12
    loss = jnp.mean((y[:, :3] - t[:, :3]) ** 2)
    yq, tq = y[:, 3:], t[:, 3:]
    yqn = yq / jnp.maximum(jnp.linalg.norm(yq, axis=1, keepdims=True), eps)
    tqn = tq / jnp.maximum(jnp.linalg.norm(tq, axis=1, keepdims=True), eps)
    return loss + beta * jnp.mean((yqn - tqn) ** 2)


if __name__ == "__main__":
    beta = 512.0  # PoseNetCriterion default

    key = jax.random.PRNGKey(0)
    k1, k2, k3, k4 = jax.random.split(key, 4)

    # Small primary case: B=8 -> one (8,128) tile per core slot.
    B = 8
    y = jax.random.normal(k1, (B, 7), dtype=jnp.float32)
    t = jax.random.normal(k2, (B, 7), dtype=jnp.float32)
    loss = jax.block_until_ready(posenet_criterion(y, t, beta=beta))
    ref = jax.block_until_ready(posenet_criterion_ref(y, t, beta=beta))
    assert loss.shape == ()
    assert jnp.allclose(loss, ref, rtol=1e-4, atol=1e-4), (loss, ref)

    # Multi-tile case: exercises the two-level grid (parallel core axis +
    # per-core multi-step accumulation) and the zero-padding path.
    B2 = 300
    y2 = jax.random.normal(k3, (B2, 7), dtype=jnp.float32)
    t2 = jax.random.normal(k4, (B2, 7), dtype=jnp.float32)
    loss2 = jax.block_until_ready(
        posenet_criterion(y2, t2, beta=beta, block_b=128))
    ref2 = jax.block_until_ready(posenet_criterion_ref(y2, t2, beta=beta))
    assert jnp.allclose(loss2, ref2, rtol=1e-4, atol=1e-4), (loss2, ref2)

    print("KERNEL_OK")
</pallas_src>

<mosaic_0001>
module attributes {stable_mosaic.version = 11 : i64} {
  func.func @kernel(%arg0: i32, %arg1: i32, %arg2: memref<8x128xf32, #tpu.memory_space<vmem>>, %arg3: memref<8x128xf32, #tpu.memory_space<vmem>>, %arg4: memref<1x128xf32, #tpu.memory_space<vmem>>, %arg5: memref<1x128xf32, #tpu.memory_space<vmem>>) attributes {dimension_semantics = [#tpu.dimension_semantics<parallel>, #tpu.dimension_semantics<arbitrary>], iteration_bounds = array<i64: 2, 1>, scalar_prefetch = 0 : i64, scratch_operands = 1 : i64, tpu.core_type = #tpu.core_type<tc>, window_params = [{transform_indices = @transform_0, window_bounds = array<i64: 8, 128>}, {transform_indices = @transform_1, window_bounds = array<i64: 8, 128>}, {transform_indices = @transform_2, window_bounds = array<i64: 1, 128>}]} {
    %c0_i32 = arith.constant 0 : i32
    %0 = arith.cmpi eq, %arg1, %c0_i32 : i32
    %1 = arith.extui %0 : i1 to i32
    %c0_i32_0 = arith.constant 0 : i32
    %2 = arith.cmpi ne, %1, %c0_i32_0 : i32
    scf.if %2 {
      %cst_17 = arith.constant 0.000000e+00 : f32
      %44 = vector.broadcast %cst_17 : f32 to vector<1x128xf32>
      %c0_18 = arith.constant 0 : index
      %c0_19 = arith.constant 0 : index
      %45 = vector.load %arg5[%c0_18, %c0_19] : memref<1x128xf32, #tpu.memory_space<vmem>>, vector<1x128xf32>
      tpu.vector_store %arg5[%c0_18, %c0_19], %44 {strides = array<i32>} : memref<1x128xf32, #tpu.memory_space<vmem>>, vector<1x128xf32>,
    } else {
    }
    %c0 = arith.constant 0 : index
    %c0_1 = arith.constant 0 : index
    %3 = vector.load %arg2[%c0, %c0_1] : memref<8x128xf32, #tpu.memory_space<vmem>>, vector<8x128xf32>
    %c0_2 = arith.constant 0 : index
    %c0_3 = arith.constant 0 : index
    %4 = vector.load %arg3[%c0_2, %c0_3] : memref<8x128xf32, #tpu.memory_space<vmem>>, vector<8x128xf32>
    %5 = vector.extract_strided_slice %3 {offsets = [0, 0], sizes = [3, 128], strides = [1, 1]} : vector<8x128xf32> to vector<3x128xf32>
    %6 = vector.extract_strided_slice %3 {offsets = [3, 0], sizes = [4, 128], strides = [1, 1]} : vector<8x128xf32> to vector<4x128xf32>
    %7 = vector.extract_strided_slice %4 {offsets = [0, 0], sizes = [3, 128], strides = [1, 1]} : vector<8x128xf32> to vector<3x128xf32>
    %8 = vector.extract_strided_slice %4 {offsets = [3, 0], sizes = [4, 128], strides = [1, 1]} : vector<8x128xf32> to vector<4x128xf32>
    %9 = arith.subf %5, %7 : vector<3x128xf32>
    %10 = arith.mulf %9, %9 : vector<3x128xf32>
    %cst = arith.constant dense<0.000000e+00> : vector<128xf32>
    %11 = vector.multi_reduction <add>, %10, %cst [0] : vector<3x128xf32> to vector<128xf32>
    %12 = vector.shape_cast %11 : vector<128xf32> to vector<1x128xf32>
    %13 = arith.mulf %6, %6 : vector<4x128xf32>
    %cst_4 = arith.constant dense<0.000000e+00> : vector<128xf32>
    %14 = vector.multi_reduction <add>, %13, %cst_4 [0] : vector<4x128xf32> to vector<128xf32>
    %15 = vector.shape_cast %14 : vector<128xf32> to vector<1x128xf32>
    %cst_5 = arith.constant 1.000000e-24 : f32
    %16 = vector.broadcast %cst_5 : f32 to vector<1x128xf32>
    %17 = arith.maximumf %15, %16 : vector<1x128xf32>
    %18 = math.rsqrt %17 : vector<1x128xf32>
    %19 = arith.mulf %8, %8 : vector<4x128xf32>
    %cst_6 = arith.constant dense<0.000000e+00> : vector<128xf32>
    %20 = vector.multi_reduction <add>, %19, %cst_6 [0] : vector<4x128xf32> to vector<128xf32>
    %21 = vector.shape_cast %20 : vector<128xf32> to vector<1x128xf32>
    %cst_7 = arith.constant 1.000000e-24 : f32
    %22 = vector.broadcast %cst_7 : f32 to vector<1x128xf32>
    %23 = arith.maximumf %21, %22 : vector<1x128xf32>
    %24 = math.rsqrt %23 : vector<1x128xf32>
    %25 = vector.broadcast %18 : vector<1x128xf32> to vector<4x128xf32>
    %26 = arith.mulf %6, %25 : vector<4x128xf32>
    %27 = vector.broadcast %24 : vector<1x128xf32> to vector<4x128xf32>
    %28 = arith.mulf %8, %27 : vector<4x128xf32>
    %29 = arith.subf %26, %28 : vector<4x128xf32>
    %30 = arith.mulf %29, %29 : vector<4x128xf32>
    %cst_8 = arith.constant dense<0.000000e+00> : vector<128xf32>
    %31 = vector.multi_reduction <add>, %30, %cst_8 [0] : vector<4x128xf32> to vector<128xf32>
    %32 = vector.shape_cast %31 : vector<128xf32> to vector<1x128xf32>
    %c0_9 = arith.constant 0 : index
    %c0_10 = arith.constant 0 : index
    %33 = vector.load %arg5[%c0_9, %c0_10] : memref<1x128xf32, #tpu.memory_space<vmem>>, vector<1x128xf32>
    %cst_11 = arith.constant 0.0416666679 : f32
    %34 = vector.broadcast %cst_11 : f32 to vector<1x128xf32>
    %35 = arith.mulf %12, %34 : vector<1x128xf32>
    %cst_12 = arith.constant 1.600000e+01 : f32
    %36 = vector.broadcast %cst_12 : f32 to vector<1x128xf32>
    %37 = arith.mulf %32, %36 : vector<1x128xf32>
    %38 = arith.addf %35, %37 : vector<1x128xf32>
    %39 = arith.addf %33, %38 : vector<1x128xf32>
    %c0_13 = arith.constant 0 : index
    %c0_14 = arith.constant 0 : index
    %40 = vector.load %arg5[%c0_13, %c0_14] : memref<1x128xf32, #tpu.memory_space<vmem>>, vector<1x128xf32>
    tpu.vector_store %arg5[%c0_13, %c0_14], %39 {strides = array<i32>} : memref<1x128xf32, #tpu.memory_space<vmem>>, vector<1x128xf32>,
    %c0_i32_15 = arith.constant 0 : i32
    %41 = arith.cmpi eq, %arg1, %c0_i32_15 : i32
    %42 = arith.extui %41 : i1 to i32
    %c0_i32_16 = arith.constant 0 : i32
    %43 = arith.cmpi ne, %42, %c0_i32_16 : i32
    scf.if %43 {
      %c0_17 = arith.constant 0 : index
      %c0_18 = arith.constant 0 : index
      %44 = vector.load %arg5[%c0_17, %c0_18] : memref<1x128xf32, #tpu.memory_space<vmem>>, vector<1x128xf32>
      %45 = vector.shape_cast %44 : vector<1x128xf32> to vector<1x1x128xf32>
      %cst_19 = arith.constant dense<0.000000e+00> : vector<1xf32>
      %46 = vector.multi_reduction <add>, %45, %cst_19 [1, 2] : vector<1x1x128xf32> to vector<1xf32>
      %47 = vector.shape_cast %46 : vector<1xf32> to vector<1x1x1xf32>
      %48 = vector.extract %47[0, 0, 0] : f32 from vector<1x1x1xf32>
      %49 = vector.broadcast %48 : f32 to vector<1x1xf32>
      %50 = vector.shape_cast %49 : vector<1x1xf32> to vector<1x1xf32>
      %51 = vector.broadcast %50 : vector<1x1xf32> to vector<1x128xf32>
      %c0_20 = arith.constant 0 : index
      %c0_21 = arith.constant 0 : index
      %52 = vector.load %arg4[%c0_20, %c0_21] : memref<1x128xf32, #tpu.memory_space<vmem>>, vector<1x128xf32>
      tpu.vector_store %arg4[%c0_20, %c0_21], %51 {strides = array<i32>} : memref<1x128xf32, #tpu.memory_space<vmem>>, vector<1x128xf32>,
    } else {
    }
    return
  }
  func.func @transform_0(%arg0: i32, %arg1: i32) -> (i32, i32) {
    %c1_i32 = arith.constant 1 : i32
    %0 = arith.muli %arg0, %c1_i32 : i32
    %1 = arith.addi %0, %arg1 : i32
    %c0_i32 = arith.constant 0 : i32
    %c0_i32_0 = arith.constant 0 : i32
    return %c0_i32, %1 : i32, i32
  }
  func.func @transform_1(%arg0: i32, %arg1: i32) -> (i32, i32) {
    %c1_i32 = arith.constant 1 : i32
    %0 = arith.muli %arg0, %c1_i32 : i32
    %1 = arith.addi %0, %arg1 : i32
    %c0_i32 = arith.constant 0 : i32
    %c0_i32_0 = arith.constant 0 : i32
    return %c0_i32, %1 : i32, i32
  }
  func.func @transform_2(%arg0: i32, %arg1: i32) -> (i32, i32) {
    %c0_i32 = arith.constant 0 : i32
    %c0_i32_0 = arith.constant 0 : i32
    return %c0_i32, %arg0 : i32, i32
  }
}

</mosaic_0001>

<llo_original>
// kernel: posenet_criterion.1
$region0: #{posenet_criterion.1}
  #allocation0 [shape = 'u32[]', space=smem, size = 0x4, offset = 0x4, fixed_abs, tag = 'smem constant byte address 0x4 - core index']
  #allocation1 [shape = 'u32[72,128]{1,0:T(1,128)}', space=vmem, size = 0x9000, scoped, tag = 'internal scratch']
  #allocation2 [shape = 'f32[1,128]{1,0:T(1,128)}', space=vmem, size = 0x200, scoped, tag = 'scratch operand']
  %s0 = inlined_call_operand.vmem [shape: f32[8,256], index: 0, kind: input, shape index: {}]
  %s1 = inlined_call_operand.vmem [shape: f32[8,256], index: 1, kind: input, shape index: {}]
  %s2 = inlined_call_operand.vmem [shape: f32[1,256], index: 2, kind: output, shape index: {}]
  %s3 = sld [smem:[#allocation0]]
  $region49: #{posenet_criterion.1} parent=0
    _
  %s5 = ssub.s32 1, %s3
  %s6 = scalar_select 0, %s5, %s3
  loop: start=0, step=1, limit=4
  $region2: #{posenet_criterion.1} parent=0 // loop_pre_header
    _
  $region3: #{posenet_criterion.1} parent=0 // loop_header
    %s8 = sphi 0, %s12
    %p9 = scmp.ge.s32.totalorder %s8, 4
    %s15 = sphi 0, %s27
    %s16 = sphi 0, %s23
    %s17 = sphi 0, %s15
    %s18 = sphi 0, %s16
    %s19 = sphi 0, %s17
    %s20 = sphi 0, %s18
    %s32 = sphi 0, %s34
    %s35 = sphi 0, %s32
    %s36 = sphi 0, %s35
    %s52 = sphi 0, %s36
    %s60 = sphi 0, %s62
    %s63 = sphi 0, %s60
    %s64 = sphi 0, %s63
    %s80 = sphi 0, %s64
    %s86 = sphi 0, %s88
    %s89 = sphi 0, %s86
    %s90 = sphi 0, %s89
    %s106 = sphi 0, %s90
  $region4: #{posenet_criterion.1} parent=0 // loop_header_branch
    %11 = sbr.rel (%p9) target = $region8
  $region5: #{posenet_criterion.1} parent=0 // loop_body
    %s13 = ssub.s32 %s8, 1
    %s14 = ssub.s32 %s8, 2
    %s21 = sadd.s32 1, %s16
    %p22 = scmp.ge.s32.totalorder %s21, 1
    %s23 = scalar_select %p22, 0, %s21
    %s24 = sadd.s32 1, %s15
    %s25 = scalar_select %p22, %s24, %s15
    %p26 = scmp.ge.s32.totalorder %s25, 2
    %s27 = scalar_select %p26, 0, %s25
    %s28 = sadd.s32 %s15, %s16
    %s29 = sadd.s32 %s27, %s23
    %s30 = ssub.s32 %s28, %s29
    %p31 = scmp.eq.s32.totalorder %s30, 0
    %s33 = sadd.s32 %s32, 1
    %s34 = scalar_select %p31, %s32, %s33
    %p37 = pneg %p31
    %p38 = scmp.eq.s32.totalorder %s8, 1
    %p39 = por %p37, %p38
    %p40 = scmp.ne.s32.totalorder %s32, %s35
    %p41 = scmp.eq.s32.totalorder %s8, 0
    %p42 = por %p40, %p41
    %p43 = scmp.ne.s32.totalorder %s32, %s35
    %p44 = scmp.eq.s32.totalorder %s13, 1
    %p45 = por %p43, %p44
    %p46 = scmp.ne.s32.totalorder %s35, %s36
    %p47 = scmp.eq.s32.totalorder %s13, 0
    %p48 = por %p46, %p47
    %p49 = scmp.ne.s32.totalorder %s35, %s36
    %p50 = scmp.eq.s32.totalorder %s14, 1
    %p51 = por %p49, %p50
    %p53 = scmp.ne.s32.totalorder %s36, %s52
    %p54 = scmp.eq.s32.totalorder %s14, 0
    %p55 = por %p53, %p54
    %s56 = sadd.s32 %s15, %s16
    %s57 = sadd.s32 %s27, %s23
    %s58 = ssub.s32 %s56, %s57
    %p59 = scmp.eq.s32.totalorder %s58, 0
    %s61 = sadd.s32 %s60, 1
    %s62 = scalar_select %p59, %s60, %s61
    %p65 = pneg %p59
    %p66 = scmp.eq.s32.totalorder %s8, 1
    %p67 = por %p65, %p66
    %p68 = scmp.ne.s32.totalorder %s60, %s63
    %p69 = scmp.eq.s32.totalorder %s8, 0
    %p70 = por %p68, %p69
    %p71 = scmp.ne.s32.totalorder %s60, %s63
    %p72 = scmp.eq.s32.totalorder %s13, 1
    %p73 = por %p71, %p72
    %p74 = scmp.ne.s32.totalorder %s63, %s64
    %p75 = scmp.eq.s32.totalorder %s13, 0
    %p76 = por %p74, %p75
    %p77 = scmp.ne.s32.totalorder %s63, %s64
    %p78 = scmp.eq.s32.totalorder %s14, 1
    %p79 = por %p77, %p78
    %p81 = scmp.ne.s32.totalorder %s64, %s80
    %p82 = scmp.eq.s32.totalorder %s14, 0
    %p83 = por %p81, %p82
    %s84 = ssub.s32 %s15, %s27
    %p85 = scmp.eq.s32.totalorder %s84, 0
    %s87 = sadd.s32 %s86, 1
    %s88 = scalar_select %p85, %s86, %s87
    %p91 = pneg %p85
    %p92 = scmp.eq.s32.totalorder %s8, 1
    %p93 = por %p91, %p92
    %p94 = scmp.ne.s32.totalorder %s86, %s89
    %p95 = scmp.eq.s32.totalorder %s8, 0
    %p96 = por %p94, %p95
    %p97 = scmp.ne.s32.totalorder %s86, %s89
    %p98 = scmp.eq.s32.totalorder %s13, 1
    %p99 = por %p97, %p98
    %p100 = scmp.ne.s32.totalorder %s89, %s90
    %p101 = scmp.eq.s32.totalorder %s13, 0
    %p102 = por %p100, %p101
    %p103 = scmp.ne.s32.totalorder %s89, %s90
    %p104 = scmp.eq.s32.totalorder %s14, 1
    %p105 = por %p103, %p104
    %p107 = scmp.ne.s32.totalorder %s90, %s106
    %p108 = scmp.eq.s32.totalorder %s14, 0
    %p109 = por %p107, %p108
    %p110 = scmp.le.s32.totalorder 1, %s8
    %p111 = scmp.lt.s32.totalorder %s8, 3
    %p112 = pnand %p110, %p111
    %p113 = pneg %p112
    // Predicated region
    $region9: #{posenet_criterion.1} parent=5 // pred_check
      _
    $region10: #{posenet_criterion.1} parent=5 // pred_check_branch
      %115 = sbr.rel (%p112) target = $region12
    $region11: #{posenet_criterion.1} parent=5 // pred_region
      %s116 = ssub.s32 %s8, 1
    $region12: #{posenet_criterion.1} parent=5 // pred_fallthru
      _
    %p117 = scmp.lt.s32.totalorder %s8, 2
    // Predicated region
    $region13: #{posenet_criterion.1} parent=5 // pred_check
      %p118 = pneg %p117
    $region14: #{posenet_criterion.1} parent=5 // pred_check_branch
      %120 = sbr.rel (%p118) target = $region16
    $region15: #{posenet_criterion.1} parent=5 // pred_region
      // Predicated region
      $region17: #{posenet_criterion.1} parent=15 // pred_check
        %p121 = pneg %p42
      $region18: #{posenet_criterion.1} parent=15 // pred_check_branch
        %123 = sbr.rel (%p121) target = $region20
      $region19: #{posenet_criterion.1} parent=15 // pred_region
        %s124 = sadd.s32 %s15, %s16
        %p125 = scmp.lt.s32.totalorder %s124, 1
        %s126 = scalar_select %p125, %s124, 1
        %s127 = smul.addr %s126, 8
        %s128 = scalar_lea.vmem %s0, %s127
        %s129 = sadd.s32 %s15, %s16
      $region20: #{posenet_criterion.1} parent=15 // pred_fallthru
        _
      // Predicated region
      $region21: #{posenet_criterion.1} parent=15 // pred_check
        %p130 = pneg %p70
      $region22: #{posenet_criterion.1} parent=15 // pred_check_branch
        %132 = sbr.rel (%p130) target = $region24
      $region23: #{posenet_criterion.1} parent=15 // pred_region
        %s133 = sadd.s32 %s15, %s16
        %p134 = scmp.lt.s32.totalorder %s133, 1
        %s135 = scalar_select %p134, %s133, 1
        %s136 = smul.addr %s135, 8
        %s137 = scalar_lea.vmem %s1, %s136
        %s138 = sadd.s32 %s15, %s16
      $region24: #{posenet_criterion.1} parent=15 // pred_fallthru
        _
    $region16: #{posenet_criterion.1} parent=5 // pred_fallthru
      _
    %p139 = scmp.le.s32.totalorder 1, %s8
    %p140 = scmp.lt.s32.totalorder %s8, 3
    %p141 = pnand %p139, %p140
    %p142 = pneg %p141
    // Predicated region
    $region25: #{posenet_criterion.1} parent=5 // pred_check
      _
    $region26: #{posenet_criterion.1} parent=5 // pred_check_branch
      %144 = sbr.rel (%p141) target = $region28
    $region27: #{posenet_criterion.1} parent=5 // pred_region
      %s145 = ssub.s32 %s8, 1
      %s146 = sadd.s32 %s17, %s18
      %p147 = scmp.lt.s32.totalorder %s146, 1
      %s148 = scalar_select %p147, %s146, 1
      %s149 = smul.addr %s148, 8
      %s150 = scalar_lea.vmem %s0, %s149
      %p151 = pneg %p48
      %p152 = pneg %p45
      %s153 = sadd.s32 %s17, %s18
      %p154 = scmp.lt.s32.totalorder %s153, 1
      %s155 = scalar_select %p154, %s153, 1
      %s156 = smul.addr %s155, 8
      %s157 = scalar_lea.vmem %s1, %s156
      %p158 = pneg %p76
      %p159 = pneg %p73
      %p160 = pneg %p102
      %p161 = pneg %p99
      %p162 = scmp.lt.s32.totalorder %s17, 1
      %s163 = scalar_select %p162, %s17, 1
      %s164 = scalar_lea.vmem %s2, %s163
      %s165 = sadd.s32 %s17, %s18
      %p166 = scmp.lt.s32.totalorder %s165, 1
      %s167 = scalar_select %p166, %s165, 1
      %s168 = smul.addr %s167, 8
      %s169 = scalar_lea.vmem %s0, %s168
      %s170 = sadd.s32 %s17, %s18
      %s171 = sadd.s32 %s17, %s18
      %p172 = scmp.lt.s32.totalorder %s171, 1
      %s173 = scalar_select %p172, %s171, 1
      %s174 = smul.addr %s173, 8
      %s175 = scalar_lea.vmem %s1, %s174
      %s176 = sadd.s32 %s17, %s18
      %p177 = scmp.lt.s32.totalorder %s17, 1
      %s178 = scalar_select %p177, %s17, 1
      %s179 = scalar_lea.vmem %s2, %s178
      %p180 = scmp.eq.s32.totalorder %s18, 0
      // Predicated region
      $region29: #{posenet_criterion.1} parent=27 // pred_check
        %p181 = pneg %p180
      $region30: #{posenet_criterion.1} parent=27 // pred_check_branch
        %183 = sbr.rel (%p181) target = $region32
      $region31: #{posenet_criterion.1} parent=27 // pred_region
        %184 = vst [vmem:[#allocation2] sm:$0x1] 0.0
      $region32: #{posenet_criterion.1} parent=27 // pred_fallthru
        _
      %v185 = vld [vmem:[%s169] sm:$0xff]
      %v186 = vld [vmem:[%s175] sm:$0xff]
      %v187 = vsub.f32 %v185, %v186
      %v188 = vmul.f32 %v187, %v187
      %vm189 = vcmask 1042432
      %v190 = vsel %vm189, %v188, 0.0
      %v191 = vrot.slane %v190, 4
      %v192 = vadd.f32 %v190, %v191
      %v193 = vrot.slane %v192, 2
      %v194 = vadd.f32 %v192, %v193
      %v195 = vrot.slane %v194, 1
      %v196 = vadd.f32 %v194, %v195
      %v197 = vmul.f32 %v185, %v185
      %v199 = vrot.slane %v197, 3
      %vm201 = vcmask 1043456
      %v202 = vsel %vm201, %v199, 0.0
      %v203 = vrot.slane %v202, 4
      %v204 = vadd.f32 %v202, %v203
      %v205 = vrot.slane %v204, 2
      %v206 = vadd.f32 %v204, %v205
      %v207 = vrot.slane %v206, 1
      %v208 = vadd.f32 %v206, %v207
      %v209 = vmax.f32 %v208, 1e-24
      %v210 = vrsqrt.pop %v209
      %v211 = vmul.f32 %v210, %v209
      %v212 = vmul.f32 %v211, %v210
      %v213 = vmul.f32 0.5, %v212
      %v214 = vsub.f32 1.5, %v213
      %v215 = vmul.f32 %v210, %v214
      %vm216 = vweird.f32 %v209
      %vm217 = vweird.f32 %v210
      %vm218 = vmor %vm216, %vm217
      %v219 = vsel %vm218, %v210, %v215
      %v220 = vmul.f32 %v186, %v186
      %v222 = vrot.slane %v220, 3
      %v224 = vsel %vm201, %v222, 0.0
      %v225 = vrot.slane %v224, 4
      %v226 = vadd.f32 %v224, %v225
      %v227 = vrot.slane %v226, 2
      %v228 = vadd.f32 %v226, %v227
      %v229 = vrot.slane %v228, 1
      %v230 = vadd.f32 %v228, %v229
      %v231 = vmax.f32 %v230, 1e-24
      %v232 = vrsqrt.pop %v231
      %v233 = vmul.f32 %v232, %v231
      %v234 = vmul.f32 %v233, %v232
      %v235 = vmul.f32 0.5, %v234
      %v236 = vsub.f32 1.5, %v235
      %v237 = vmul.f32 %v232, %v236
      %vm238 = vweird.f32 %v231
      %vm239 = vweird.f32 %v232
      %vm240 = vmor %vm238, %vm239
      %v241 = vsel %vm240, %v232, %v237
      %v242 = vmul.f32 %v185, %v219
      %v243 = vmul.f32 %v186, %v241
      %v244 = vsub.f32 %v242, %v243
      %v245 = vmul.f32 %v244, %v244
      %v247 = vrot.slane %v245, 3
      %v249 = vsel %vm201, %v247, 0.0
      %v250 = vrot.slane %v249, 4
      %v251 = vadd.f32 %v249, %v250
      %v252 = vrot.slane %v251, 2
      %v253 = vadd.f32 %v251, %v252
      %v254 = vrot.slane %v253, 1
      %v255 = vadd.f32 %v253, %v254
      %v256 = vld [vmem:[#allocation2] sm:$0x1]
      %v257 = vmul.f32 %v196, 0.041666668
      %v258 = vmul.f32 %v255, 16.0
      %v259 = vadd.f32 %v257, %v258
      %v260 = vadd.f32 %v256, %v259
      %261 = vst [vmem:[#allocation2] sm:$0x1] %v260
      // Predicated region
      $region33: #{posenet_criterion.1} parent=27 // pred_check
        %p262 = pneg %p180
      $region34: #{posenet_criterion.1} parent=27 // pred_check_branch
        %264 = sbr.rel (%p262) target = $region36
      $region35: #{posenet_criterion.1} parent=27 // pred_region
        %v265 = vld [vmem:[#allocation2] sm:$0x1]
        %vm266 = vcmask 1040384
        %v267 = vsel %vm266, %v265, 0.0
        %268 = vadd.xlane.f32.xlu0 %v267
        %v269 = vpop.xlane.xlu0 %268
        %v270 = vrot.slane %v269, 4
        %v271 = vadd.f32 %v269, %v270
        %v272 = vrot.slane %v271, 2
        %v273 = vadd.f32 %v271, %v272
        %v274 = vrot.slane %v273, 1
        %v275 = vadd.f32 %v273, %v274
        %s276 = vtos %v275
        %v277 = vstv %s276
        %278 = vst [vmem:[%s179] sm:$0x1] %v277
      $region36: #{posenet_criterion.1} parent=27 // pred_fallthru
        _
      %p279 = scmp.lt.s32.totalorder %s17, 1
      %s280 = scalar_select %p279, %s17, 1
      %s281 = scalar_lea.vmem %s2, %s280
      // Predicated region
      $region37: #{posenet_criterion.1} parent=27 // pred_check
        %p282 = pneg %p99
      $region38: #{posenet_criterion.1} parent=27 // pred_check_branch
        %284 = sbr.rel (%p282) target = $region40
      $region39: #{posenet_criterion.1} parent=27 // pred_region
        _
      $region40: #{posenet_criterion.1} parent=27 // pred_fallthru
        _
    $region28: #{posenet_criterion.1} parent=5 // pred_fallthru
      _
    %p285 = scmp.le.s32.totalorder 2, %s8
    // Predicated region
    $region41: #{posenet_criterion.1} parent=5 // pred_check
      %p286 = pneg %p285
    $region42: #{posenet_criterion.1} parent=5 // pred_check_branch
      %288 = sbr.rel (%p286) target = $region44
    $region43: #{posenet_criterion.1} parent=5 // pred_region
      %s289 = ssub.s32 %s8, 2
      // Predicated region
      $region45: #{posenet_criterion.1} parent=43 // pred_check
        %p290 = pneg %p105
      $region46: #{posenet_criterion.1} parent=43 // pred_check_branch
        %292 = sbr.rel (%p290) target = $region48
      $region47: #{posenet_criterion.1} parent=43 // pred_region
        %p293 = scmp.lt.s32.totalorder %s19, 1
        %s294 = scalar_select %p293, %s19, 1
        %s295 = scalar_lea.vmem %s2, %s294
      $region48: #{posenet_criterion.1} parent=43 // pred_fallthru
        _
    $region44: #{posenet_criterion.1} parent=5 // pred_fallthru
      _
  $region6: #{posenet_criterion.1} parent=0 // loop_footer
    %s12 = sadd.s32 1, %s8
  $region7: #{posenet_criterion.1} parent=0 // loop_footer_branch
    %7 = sbr.rel target = $region3
  $region8: #{posenet_criterion.1} parent=0 // loop_exit
    _

</llo_original>
